<compile_context>
chip_gen: v7x
topology: tpu7x:2x2x1
jax: 0.10.0
libtpu: 0.0.40
codegen_flags: <defaults>
</compile_context>

<pallas_src>
import functools

import jax
import jax.numpy as jnp
import numpy as np
from jax.experimental import pallas as pl
from jax.experimental.pallas import tpu as pltpu

NUM_QUBITS = 8          # input_size = min(num_features, NUM_QUBITS)
_H1, _H2 = 32, 16       # classical_backup hidden sizes
_LANES = 128            # TPU lane width


def _round_up(x, m):
    return (x + m - 1) // m * m


def _layout(f_s, f_d):
    """Static row offsets of each parameter block inside the packed [K, 128] slab."""
    a_s = _round_up(max(f_s, 1), 8)        # W1 static-feature rows (8-aligned)
    a_d = _round_up(max(f_d, 1), 8)        # W1 dynamic-feature rows (8-aligned)
    k2 = _round_up(_H1 + 1, 8)             # W2 rows: 32 + 1 bias row -> 40
    k3 = _round_up(_H2 + 1, 8)             # W3 rows: 16 + 1 bias row -> 24
    off_w1s = 0
    off_w1d = a_s
    off_b1 = a_s + a_d                     # 8-aligned bias row (rows 1..7 zero)
    off_w2 = off_b1 + 8
    off_w3 = off_w2 + k2
    k = off_w3 + k3                        # f_s=4,f_d=6 -> 88 rows = 44 KiB
    return dict(off_w1s=off_w1s, off_w1d=off_w1d, off_b1=off_b1,
                off_w2=off_w2, off_w3=off_w3, k2=k2, k3=k3, k=k)


def init_classical_backup_params(key, input_size):
    """Deterministic init mirroring nn.Linear default (uniform +- 1/sqrt(fan_in))."""
    ks = jax.random.split(key, 6)

    def lin(kw, kb, fan_in, fan_out):
        bound = 1.0 / np.sqrt(fan_in)
        w = jax.random.uniform(kw, (fan_in, fan_out), jnp.float32, -bound, bound)
        b = jax.random.uniform(kb, (fan_out,), jnp.float32, -bound, bound)
        return w, b

    w1, b1 = lin(ks[0], ks[1], input_size, _H1)
    w2, b2 = lin(ks[2], ks[3], _H1, _H2)
    w3, b3 = lin(ks[4], ks[5], _H2, 1)
    return (w1, b1, w2, b2, w3, b3)


def pack_classical_backup_params(params, f_s, f_d):
    """One-time packing of the six MLP tensors into a single trimmed [K, 128] slab.

    * W1 is zero-padded to the full (f_s + f_d) mean-feature width (reproducing
      torch's `inputs[:input_size]` slice) and split into a static and a dynamic
      block so no concatenated node-feature buffer is ever materialized.
    * b1 carries a constant 1.0 in lane _H1; W2 carries an extra row holding b2 and
      a 1.0 in column _H2; W3 carries an extra row holding b3.  The constant-1 lane
      survives the ReLUs, so b2/b3 are applied by the matmuls themselves.
    """
    w1, b1, w2, b2, w3, b3 = (np.asarray(p, np.float32) for p in params)
    input_size = w1.shape[0]
    assert input_size <= f_s + f_d
    lay = _layout(f_s, f_d)
    slab = np.zeros((lay["k"], _LANES), np.float32)

    # W1, zero-padded to full mean width, split static / dynamic.
    w1_full = np.zeros((f_s + f_d, _H1), np.float32)
    w1_full[:input_size, :] = w1
    slab[lay["off_w1s"]:lay["off_w1s"] + f_s, :_H1] = w1_full[:f_s]
    slab[lay["off_w1d"]:lay["off_w1d"] + f_d, :_H1] = w1_full[f_s:]

    # b1 row + constant-1 bias lane (lane _H1) used to fold b2/b3 downstream.
    slab[lay["off_b1"], :_H1] = b1
    slab[lay["off_b1"], _H1] = 1.0

    # W2 augmented: rows 0..31 = w2, row 32 = [b2 | 1.0 in col _H2].
    slab[lay["off_w2"]:lay["off_w2"] + _H1, :_H2] = w2
    slab[lay["off_w2"] + _H1, :_H2] = b2
    slab[lay["off_w2"] + _H1, _H2] = 1.0

    # W3 augmented: rows 0..15 col 0 = w3, row 16 col 0 = b3.
    slab[lay["off_w3"]:lay["off_w3"] + _H2, :1] = w3
    slab[lay["off_w3"] + _H2, 0] = b3[0]
    return jnp.asarray(slab)


def _qgraph_mlp_kernel(lay, static_ref, dyn_ref, w_ref, out_ref):
    """Shared MLP body over a block of `tb` time steps.

    static_ref: [N, F_s]      dyn_ref: [tb, N, F_d]
    w_ref:      [K, 128]      out_ref: [tb, 128]   (prediction in lane 0)
    """
    tb, n, f_d = dyn_ref.shape
    f_s = static_ref.shape[1]
    inv_n = jnp.float32(1.0 / n)

    # Static-feature contribution + b1: computed ONCE and reused for all tb steps.
    # Mean over nodes expressed as an MXU matmul (avoids a cross-sublane reduce).
    ones = jnp.full((1, n), inv_n, dtype=jnp.float32)
    mean_s = jnp.dot(ones, static_ref[...], preferred_element_type=jnp.float32)   # [1, f_s]
    w1s = w_ref[lay["off_w1s"]:lay["off_w1s"] + f_s, :]                            # [f_s, 128]
    b1 = w_ref[lay["off_b1"]:lay["off_b1"] + 1, :]                                 # [1, 128]
    h_base = jnp.dot(mean_s, w1s, preferred_element_type=jnp.float32) + b1         # [1, 128]

    # Per-time-step node means of the dynamic features: [tb, f_d].
    mean_d = jnp.sum(dyn_ref[...], axis=1) * inv_n

    # Static slices of the packed weight slab (free at runtime).
    w1d = w_ref[lay["off_w1d"]:lay["off_w1d"] + f_d, :]                            # [f_d, 128]
    w2 = w_ref[lay["off_w2"]:lay["off_w2"] + lay["k2"], :]                         # [k2, 128]
    w3 = w_ref[lay["off_w3"]:lay["off_w3"] + lay["k3"], :]                         # [k3, 128]

    # mean_cat @ W1 == mean_s @ W1_s + mean_d @ W1_d (split concat).  Lane 32 of h1
    # and lane 16 of h2 are the constant-1 bias lanes; b2/b3 live in W2/W3 rows.
    h1 = jnp.maximum(
        h_base + jnp.dot(mean_d, w1d, preferred_element_type=jnp.float32), 0.0)    # [tb, 128]
    h2 = jnp.maximum(
        jnp.dot(h1[:, :lay["k2"]], w2, preferred_element_type=jnp.float32), 0.0)   # [tb, 128]
    # Lane-dense unmasked store; real prediction lives in lane 0.
    out_ref[...] = jnp.dot(h2[:, :lay["k3"]], w3, preferred_element_type=jnp.float32)


def _single_step_kernel(lay, ts_ref, static_ref, dyn_ref, w_ref, out_ref):
    # ts_ref: SMEM scalar-prefetch ref; consumed only by the dynamic index_map.
    del ts_ref
    _qgraph_mlp_kernel(lay, static_ref, dyn_ref, w_ref, out_ref)


def qgraph_predictor_forward(static, dynamic_tnf, time_step, packed_params):
    """Pallas implementation of QGraphPredictor.forward for a single time step.

    static:        [N, F_s] f32    (data.x)
    dynamic_tnf:   [T, N, F_d] f32 (data.dynamic stored TIME-MAJOR, converted once)
    time_step:     int / int32 scalar (may be traced -> no recompile per step)
    packed_params: [K, 128] f32 slab from pack_classical_backup_params
    returns: (scalar prediction, overlap=0.0)
    """
    static = static.astype(jnp.float32)
    dynamic_tnf = dynamic_tnf.astype(jnp.float32)
    n, f_s = static.shape
    t, n2, f_d = dynamic_tnf.shape
    assert n == n2
    lay = _layout(f_s, f_d)
    k = packed_params.shape[0]
    assert k == lay["k"]

    # Clamp to valid range (review: avoid silent OOB slice for a bad time_step).
    ts = jnp.clip(jnp.asarray(time_step, jnp.int32), 0, t - 1).reshape((1,))
    kernel = functools.partial(_single_step_kernel, lay)

    grid_spec = pltpu.PrefetchScalarGridSpec(
        num_scalar_prefetch=1,
        grid=(1,),
        in_specs=[
            pl.BlockSpec((n, f_s), lambda i, ts_ref: (0, 0)),              # static
            # time-major dynamic: DMA only the [1, N, F_d] slice at time_step
            pl.BlockSpec((1, n, f_d), lambda i, ts_ref: (ts_ref[0], 0, 0)),
            pl.BlockSpec((k, _LANES), lambda i, ts_ref: (0, 0)),           # weight slab
        ],
        out_specs=pl.BlockSpec((1, _LANES), lambda i, ts_ref: (0, 0)),
    )
    out = pl.pallas_call(
        kernel,
        out_shape=jax.ShapeDtypeStruct((1, _LANES), jnp.float32),
        grid_spec=grid_spec,
        compiler_params=pltpu.CompilerParams(dimension_semantics=("arbitrary",)),
    )(ts, static, dynamic_tnf, packed_params)

    overlap = 0.0  # classical-backup branch of the torch module returns 0.0
    return out[0, 0], overlap


def _pick_time_block(t):
    if t > 8 and t % 8 == 0:
        return 8
    return t


def qgraph_predictor_forward_all_steps(static, dynamic_tnf, packed_params):
    """Batched variant: predictions for ALL T time steps in one pallas_call.

    Amortizes dispatch and the weight-slab / static-feature DMA across the whole
    time axis; the time-block grid axis is "parallel" so v7x can split it across
    its two TensorCores.  Returns ([T] predictions, [T] overlaps==0).
    """
    static = static.astype(jnp.float32)
    dynamic_tnf = dynamic_tnf.astype(jnp.float32)
    n, f_s = static.shape
    t, n2, f_d = dynamic_tnf.shape
    assert n == n2
    lay = _layout(f_s, f_d)
    k = packed_params.shape[0]
    assert k == lay["k"]

    tb = _pick_time_block(t)
    assert t % tb == 0
    kernel = functools.partial(_qgraph_mlp_kernel, lay)

    grid_spec = pltpu.PrefetchScalarGridSpec(
        num_scalar_prefetch=0,
        grid=(t // tb,),
        in_specs=[
            pl.BlockSpec((n, f_s), lambda i: (0, 0)),          # static (resident)
            pl.BlockSpec((tb, n, f_d), lambda i: (i, 0, 0)),   # time block
            pl.BlockSpec((k, _LANES), lambda i: (0, 0)),       # weight slab (resident)
        ],
        out_specs=pl.BlockSpec((tb, _LANES), lambda i: (i, 0)),
    )
    out = pl.pallas_call(
        kernel,
        out_shape=jax.ShapeDtypeStruct((t, _LANES), jnp.float32),
        grid_spec=grid_spec,
        compiler_params=pltpu.CompilerParams(dimension_semantics=("parallel",)),
    )(static, dynamic_tnf, packed_params)

    return out[:, 0], jnp.zeros((t,), jnp.float32)


def _reference_forward(static, dynamic_ntf, time_step, params):
    """Pure-JAX reference mirroring the torch semantics (for validation)."""
    w1, b1, w2, b2, w3, b3 = params
    node_features = jnp.concatenate([static, dynamic_ntf[:, time_step, :]], axis=-1)
    inputs = jnp.mean(node_features, axis=0)[: w1.shape[0]]
    h1 = jnp.maximum(inputs @ w1 + b1, 0.0)
    h2 = jnp.maximum(h1 @ w2 + b2, 0.0)
    return (h2 @ w3 + b3)[0]


if __name__ == "__main__":
    key = jax.random.PRNGKey(0)
    k_static, k_dynamic, k_params = jax.random.split(key, 3)

    # Small graph: 16 nodes, 4 static features, 8 time steps, 6 dynamic features.
    N, F_S, T, F_D = 16, 4, 8, 6
    static = jax.random.normal(k_static, (N, F_S), jnp.float32)        # data.x
    dynamic = jax.random.normal(k_dynamic, (N, T, F_D), jnp.float32)   # data.dynamic
    time_step = 3

    input_size = min(F_S + F_D, NUM_QUBITS)  # len(input_params) of the feature map
    params = init_classical_backup_params(k_params, input_size)

    # One-time init-path work (hoisted out of the per-call path):
    packed = pack_classical_backup_params(params, F_S, F_D)   # trimmed weight slab
    dynamic_tnf = jnp.transpose(dynamic, (1, 0, 2))           # store time-major once

    # Single-time-step forward (matches the torch forward signature).
    fwd = jax.jit(qgraph_predictor_forward)
    pred, overlap = fwd(static, dynamic_tnf, time_step, packed)
    pred = jax.block_until_ready(pred)
    ref = _reference_forward(static, dynamic, time_step, params)
    np.testing.assert_allclose(np.asarray(pred), np.asarray(ref), rtol=1e-5, atol=1e-5)
    assert float(overlap) == 0.0

    # Batched forward over all T time steps in a single pallas_call.
    fwd_all = jax.jit(qgraph_predictor_forward_all_steps)
    preds_all, overlaps = fwd_all(static, dynamic_tnf, packed)
    preds_all = jax.block_until_ready(preds_all)
    ref_all = np.array([_reference_forward(static, dynamic, tt, params)
                        for tt in range(T)], np.float32)
    np.testing.assert_allclose(np.asarray(preds_all), ref_all, rtol=1e-5, atol=1e-5)
    np.testing.assert_allclose(np.asarray(overlaps), np.zeros((T,), np.float32))

    print("KERNEL_OK")
</pallas_src>

<mosaic_0001>
module attributes {stable_mosaic.version = 11 : i64} {
  func.func @_single_step_kernel(%arg0: i32, %arg1: memref<1xi32, #tpu.memory_space<smem>>, %arg2: memref<16x4xf32, #tpu.memory_space<vmem>>, %arg3: memref<1x16x6xf32, #tpu.memory_space<vmem>>, %arg4: memref<88x128xf32, #tpu.memory_space<vmem>>, %arg5: memref<1x128xf32, #tpu.memory_space<vmem>>) attributes {dimension_semantics = [#tpu.dimension_semantics<arbitrary>], iteration_bounds = array<i64: 1>, scalar_prefetch = 1 : i64, scratch_operands = 0 : i64, tpu.core_type = #tpu.core_type<tc>, window_params = [{pipeline_mode = #tpu.pipeline_mode<synchronous>, transform_indices = @transform_0, window_bounds = array<i64: 16, 4>}, {transform_indices = @transform_1, window_bounds = array<i64: 1, 16, 6>}, {pipeline_mode = #tpu.pipeline_mode<synchronous>, transform_indices = @transform_2, window_bounds = array<i64: 88, 128>}, {pipeline_mode = #tpu.pipeline_mode<synchronous>, transform_indices = @transform_3, window_bounds = array<i64: 1, 128>}]} {
    %cst = arith.constant 6.250000e-02 : f32
    %0 = vector.broadcast %cst : f32 to vector<1x16xf32>
    %c0 = arith.constant 0 : index
    %c0_0 = arith.constant 0 : index
    %1 = vector.load %arg2[%c0, %c0_0] : memref<16x4xf32, #tpu.memory_space<vmem>>, vector<16x4xf32>
    %cst_1 = arith.constant dense<0.000000e+00> : vector<1x4xf32>
    %2 = tpu.matmul %0, %1, %cst_1 {dimension_numbers = #tpu.dot_dimension_numbers<[1], [0], [0], [1], [0, 0, 1, 1], [], []>} : vector<1x16xf32>, vector<16x4xf32>, vector<1x4xf32> -> vector<1x4xf32>
    %c0_2 = arith.constant 0 : index
    %c0_3 = arith.constant 0 : index
    %3 = vector.load %arg4[%c0_2, %c0_3] : memref<88x128xf32, #tpu.memory_space<vmem>>, vector<4x128xf32>
    %c16 = arith.constant 16 : index
    %c0_4 = arith.constant 0 : index
    %4 = vector.load %arg4[%c16, %c0_4] : memref<88x128xf32, #tpu.memory_space<vmem>>, vector<1x128xf32>
    %cst_5 = arith.constant dense<0.000000e+00> : vector<1x128xf32>
    %5 = tpu.matmul %2, %3, %cst_5 {dimension_numbers = #tpu.dot_dimension_numbers<[1], [0], [0], [1], [0, 0, 1, 1], [], []>} : vector<1x4xf32>, vector<4x128xf32>, vector<1x128xf32> -> vector<1x128xf32>
    %6 = arith.addf %5, %4 : vector<1x128xf32>
    %c0_6 = arith.constant 0 : index
    %c0_7 = arith.constant 0 : index
    %c0_8 = arith.constant 0 : index
    %7 = vector.load %arg3[%c0_6, %c0_7, %c0_8] : memref<1x16x6xf32, #tpu.memory_space<vmem>>, vector<1x16x6xf32>
    %cst_9 = arith.constant dense<0.000000e+00> : vector<1x6xf32>
    %8 = vector.multi_reduction <add>, %7, %cst_9 [1] : vector<1x16x6xf32> to vector<1x6xf32>
    %cst_10 = arith.constant 6.250000e-02 : f32
    %9 = vector.broadcast %cst_10 : f32 to vector<1x6xf32>
    %10 = arith.mulf %8, %9 : vector<1x6xf32>
    %c8 = arith.constant 8 : index
    %c0_11 = arith.constant 0 : index
    %11 = vector.load %arg4[%c8, %c0_11] : memref<88x128xf32, #tpu.memory_space<vmem>>, vector<6x128xf32>
    %c24 = arith.constant 24 : index
    %c0_12 = arith.constant 0 : index
    %12 = vector.load %arg4[%c24, %c0_12] : memref<88x128xf32, #tpu.memory_space<vmem>>, vector<40x128xf32>
    %c64 = arith.constant 64 : index
    %c0_13 = arith.constant 0 : index
    %13 = vector.load %arg4[%c64, %c0_13] : memref<88x128xf32, #tpu.memory_space<vmem>>, vector<24x128xf32>
    %cst_14 = arith.constant dense<0.000000e+00> : vector<1x128xf32>
    %14 = tpu.matmul %10, %11, %cst_14 {dimension_numbers = #tpu.dot_dimension_numbers<[1], [0], [0], [1], [0, 0, 1, 1], [], []>} : vector<1x6xf32>, vector<6x128xf32>, vector<1x128xf32> -> vector<1x128xf32>
    %15 = arith.addf %6, %14 : vector<1x128xf32>
    %cst_15 = arith.constant 0.000000e+00 : f32
    %16 = vector.broadcast %cst_15 : f32 to vector<1x128xf32>
    %17 = arith.maximumf %15, %16 : vector<1x128xf32>
    %18 = vector.extract_strided_slice %17 {offsets = [0, 0], sizes = [1, 40], strides = [1, 1]} : vector<1x128xf32> to vector<1x40xf32>
    %cst_16 = arith.constant dense<0.000000e+00> : vector<1x128xf32>
    %19 = tpu.matmul %18, %12, %cst_16 {dimension_numbers = #tpu.dot_dimension_numbers<[1], [0], [0], [1], [0, 0, 1, 1], [], []>} : vector<1x40xf32>, vector<40x128xf32>, vector<1x128xf32> -> vector<1x128xf32>
    %cst_17 = arith.constant 0.000000e+00 : f32
    %20 = vector.broadcast %cst_17 : f32 to vector<1x128xf32>
    %21 = arith.maximumf %19, %20 : vector<1x128xf32>
    %22 = vector.extract_strided_slice %21 {offsets = [0, 0], sizes = [1, 24], strides = [1, 1]} : vector<1x128xf32> to vector<1x24xf32>
    %cst_18 = arith.constant dense<0.000000e+00> : vector<1x128xf32>
    %23 = tpu.matmul %22, %13, %cst_18 {dimension_numbers = #tpu.dot_dimension_numbers<[1], [0], [0], [1], [0, 0, 1, 1], [], []>} : vector<1x24xf32>, vector<24x128xf32>, vector<1x128xf32> -> vector<1x128xf32>
    %c0_19 = arith.constant 0 : index
    %c0_20 = arith.constant 0 : index
    %24 = vector.load %arg5[%c0_19, %c0_20] : memref<1x128xf32, #tpu.memory_space<vmem>>, vector<1x128xf32>
    tpu.vector_store %arg5[%c0_19, %c0_20], %23 {strides = array<i32>} : memref<1x128xf32, #tpu.memory_space<vmem>>, vector<1x128xf32>,
    return
  }
  func.func @transform_0(%arg0: i32, %arg1: memref<1xi32, #tpu.memory_space<smem>>) -> (i32, i32) {
    %c0_i32 = arith.constant 0 : i32
    %c0_i32_0 = arith.constant 0 : i32
    %c0_i32_1 = arith.constant 0 : i32
    return %c0_i32, %c0_i32_0 : i32, i32
  }
  func.func @transform_1(%arg0: i32, %arg1: memref<1xi32, #tpu.memory_space<smem>>) -> (i32, i32, i32) {
    %c0 = arith.constant 0 : index
    %0 = memref.load %arg1[%c0] : memref<1xi32, #tpu.memory_space<smem>>
    %c0_i32 = arith.constant 0 : i32
    %c0_i32_0 = arith.constant 0 : i32
    %c0_i32_1 = arith.constant 0 : i32
    return %0, %c0_i32, %c0_i32_0 : i32, i32, i32
  }
  func.func @transform_2(%arg0: i32, %arg1: memref<1xi32, #tpu.memory_space<smem>>) -> (i32, i32) {
    %c0_i32 = arith.constant 0 : i32
    %c0_i32_0 = arith.constant 0 : i32
    %c0_i32_1 = arith.constant 0 : i32
    return %c0_i32, %c0_i32_0 : i32, i32
  }
  func.func @transform_3(%arg0: i32, %arg1: memref<1xi32, #tpu.memory_space<smem>>) -> (i32, i32) {
    %c0_i32 = arith.constant 0 : i32
    %c0_i32_0 = arith.constant 0 : i32
    %c0_i32_1 = arith.constant 0 : i32
    return %c0_i32, %c0_i32_0 : i32, i32
  }
}

</mosaic_0001>

<llo_original>
// kernel: qgraph_predictor_forward.1
$region0: #{qgraph_predictor_forward.1}
  #allocation0 [shape = 'u32[]', space=smem, size = 0x4, offset = 0x4, fixed_abs, tag = 'smem constant byte address 0x4 - core index']
  #allocation1 [shape = 'u32[144,128]{1,0:T(1,128)}', space=vmem, size = 0x12000, scoped, tag = 'internal scratch']
  #allocation2 [shape = 's32[1]{0}', space=sflag, size = 0x4, scoped, tag = 'scoped memory for qgraph_predictor_forward.1']
  #allocation3 [shape = 's32[1]{0:T(128)S(6)}', space=smem, size = 0x200, scoped, tag = 'prefetched SMEM operand 0']
  %s0 = inlined_call_operand.<no memory space> [shape: s32[1], index: 0, kind: input, shape index: {}]
  %s1 = inlined_call_operand.vmem [shape: f32[16,4], index: 1, kind: input, shape index: {}]
  %s2 = inlined_call_operand.vmem [shape: f32[8,16,6], index: 2, kind: input, shape index: {}]
  %s3 = inlined_call_operand.vmem [shape: f32[88,128], index: 3, kind: input, shape index: {}]
  %s4 = inlined_call_operand.hbm [shape: f32[1,128], index: 4, kind: output, shape index: {}]
  %s5 = sld [smem:[#allocation0]]
  $region22: #{qgraph_predictor_forward.1} parent=0
    _
  %s7 = ssub.s32 1, %s5
  %s8 = scalar_select 0, %s7, %s5
  %9 = sst [smem:[#allocation3]] %s0
  $region1: #{qgraph_predictor_forward.1} parent=0
    #allocation4 [shape = 'u8[512]{0}', space=vmem, size = 0x400, scoped, tag = 'output window, operand 0, single buffered']
    #allocation5 [shape = 's32[1]{0}', space=sflag, size = 0x4, scoped, tag = 'scoped memory for qgraph_predictor_forward.1']
    %10 = vsyncpa [#allocation5], 0
    // Predicated region
    $region2: #{qgraph_predictor_forward.1} parent=1 // pred_check
      _
    $region3: #{qgraph_predictor_forward.1} parent=1 // pred_check_branch
      %12 = sbr.rel (0) target = $region5
    $region4: #{qgraph_predictor_forward.1} parent=1 // pred_region
      _
    $region5: #{qgraph_predictor_forward.1} parent=1 // pred_fallthru
      _
    // Predicated region
    $region6: #{qgraph_predictor_forward.1} parent=1 // pred_check
      _
    $region7: #{qgraph_predictor_forward.1} parent=1 // pred_check_branch
      %14 = sbr.rel (0) target = $region9
    $region8: #{qgraph_predictor_forward.1} parent=1 // pred_region
      %s15 = sld [smem:[#allocation3]]
      %p16 = scmp.lt.s32.totalorder %s15, 7
      %s17 = scalar_select %p16, %s15, 7
      %s18 = smul.addr %s17, 2
      %s19 = smul.addr %s18, 8
      %s20 = scalar_lea.vmem %s2, %s19
      %s21 = sld [smem:[#allocation3]]
    $region9: #{qgraph_predictor_forward.1} parent=1 // pred_fallthru
      _
    // Predicated region
    $region10: #{qgraph_predictor_forward.1} parent=1 // pred_check
      _
    $region11: #{qgraph_predictor_forward.1} parent=1 // pred_check_branch
      %23 = sbr.rel (0) target = $region13
    $region12: #{qgraph_predictor_forward.1} parent=1 // pred_region
      _
    $region13: #{qgraph_predictor_forward.1} parent=1 // pred_fallthru
      _
    %s24 = sld [smem:[#allocation3]]
    %p25 = scmp.lt.s32.totalorder %s24, 7
    %s26 = scalar_select %p25, %s24, 7
    %s27 = smul.addr %s26, 2
    %s28 = smul.addr %s27, 8
    %s29 = scalar_lea.vmem %s2, %s28
    %s30 = sld [smem:[#allocation3]]
    %p31 = scmp.lt.s32.totalorder %s30, 7
    %s32 = scalar_select %p31, %s30, 7
    %s33 = smul.addr %s32, 2
    %s34 = smul.addr %s33, 8
    %s35 = scalar_lea.vmem %s2, %s34
    %s36 = sld [smem:[#allocation3]]
    %v37 = vld [vmem:[%s1] sm:$0xff]
    %v38 = vld [vmem:[%s1 + $0x8] sm:$0xff]
    %vm39 = vcmask 130048
    %v41 = vsel %vm39, 0.0625, 0
    %43 = vmatprep.subr.mxu0 0.0
    %44 = vmatpush1.msra.mxu0 %v37
    %45 = vmatprep.subr.mxu0 0.0
    %46 = vmatpush1.msra.mxu0 %v38
    %47 = vmatprep.subr.mxu0 0.0
    %48 = vmatpush1.msra.mxu0 0.0
    %49 = vmatprep.subr.mxu0 0.0
    %50 = vmatpush1.msra.mxu0 0.0
    %51 = vmatprep.subr.mxu0 0.0
    %52 = vmatpush1.msra.mxu0 0.0
    %53 = vmatprep.subr.mxu0 0.0
    %54 = vmatpush1.msra.mxu0 0.0
    %55 = vmatprep.subr.mxu0 0.0
    %56 = vmatpush1.msra.mxu0 0.0
    %57 = vmatprep.subr.mxu0 0.0
    %58 = vmatpush1.msra.mxu0 0.0
    %59 = vmatprep.subr.mxu0 0.0
    %60 = vmatpush1.msra.mxu0 0.0
    %61 = vmatprep.subr.mxu0 0.0
    %62 = vmatpush1.msra.mxu0 0.0
    %63 = vmatprep.subr.mxu0 0.0
    %64 = vmatpush1.msra.mxu0 0.0
    %65 = vmatprep.subr.mxu0 0.0
    %66 = vmatpush1.msra.mxu0 0.0
    %67 = vmatprep.subr.mxu0 0.0
    %68 = vmatpush1.msra.mxu0 0.0
    %69 = vmatprep.subr.mxu0 0.0
    %70 = vmatpush1.msra.mxu0 0.0
    %71 = vmatprep.subr.mxu0 0.0
    %72 = vmatpush1.msra.mxu0 0.0
    %73 = vmatprep.subr.mxu0 0.0
    %74 = vmatpush1.msra.mxu0 0.0
    %75 = vmatprep.subr.mxu0 0.0
    %76 = vmatpush1.msra.mxu0 0.0
    %77 = vmatprep.subr.mxu0 0.0
    %78 = vmatpush1.msra.mxu0 0.0
    %79 = vmatprep.subr.mxu0 0.0
    %80 = vmatpush1.msra.mxu0 0.0
    %81 = vmatprep.subr.mxu0 0.0
    %82 = vmatpush1.msra.mxu0 0.0
    %83 = vmatprep.subr.mxu0 0.0
    %84 = vmatpush1.msra.mxu0 0.0
    %85 = vmatprep.subr.mxu0 0.0
    %86 = vmatpush1.msra.mxu0 0.0
    %87 = vmatprep.subr.mxu0 0.0
    %88 = vmatpush1.msra.mxu0 0.0
    %89 = vmatprep.subr.mxu0 0.0
    %90 = vmatpush1.msra.mxu0 0.0
    %91 = vmatprep.subr.mxu0 0.0
    %92 = vmatpush1.msra.mxu0 0.0
    %93 = vmatprep.subr.mxu0 0.0
    %94 = vmatpush1.msra.mxu0 0.0
    %95 = vmatprep.subr.mxu0 0.0
    %96 = vmatpush1.msra.mxu0 0.0
    %97 = vmatprep.subr.mxu0 0.0
    %98 = vmatpush1.msra.mxu0 0.0
    %99 = vmatprep.subr.mxu0 0.0
    %100 = vmatpush1.msra.mxu0 0.0
    %101 = vmatprep.subr.mxu0 0.0
    %102 = vmatpush1.msra.mxu0 0.0
    %103 = vmatprep.subr.mxu0 0.0
    %104 = vmatpush1.msra.mxu0 0.0
    %105 = vmatprep.subr.mxu0 0.0
    %106 = vmatpush1.msra.mxu0 0.0
    %107 = vmatprep.mubr.f32.mxu0 0.0
    %108 = vmatmul.mubr.f32.gmra.mrb[0].mxu0 %v41
    %v109 = vpop.f32.mrb[0].mxu0
    %v110 = vadd.f32 0.0, %v109
    %v111 = vpop.f32.mrb[0].mxu0
    %112 = vdwg.mxu0
    %v113 = vld [vmem:[%s3] sm:$0xf]
    %v114 = vld [vmem:[%s3 + $0x10] sm:$0x1]
    %vm115 = vcmask 31744
    %v117 = vsel %vm115, %v110, 0
    %vm119 = vcmask 1043456
    %v121 = vsel %vm119, %v113, 0
    %123 = vmatprep.subr.mxu0 0.0
    %124 = vmatpush1.msra.mxu0 %v121
    %125 = vmatprep.subr.mxu0 0.0
    %126 = vmatpush1.msra.mxu0 0.0
    %127 = vmatprep.subr.mxu0 0.0
    %128 = vmatpush1.msra.mxu0 0.0
    %129 = vmatprep.subr.mxu0 0.0
    %130 = vmatpush1.msra.mxu0 0.0
    %131 = vmatprep.subr.mxu0 0.0
    %132 = vmatpush1.msra.mxu0 0.0
    %133 = vmatprep.subr.mxu0 0.0
    %134 = vmatpush1.msra.mxu0 0.0
    %135 = vmatprep.subr.mxu0 0.0
    %136 = vmatpush1.msra.mxu0 0.0
    %137 = vmatprep.subr.mxu0 0.0
    %138 = vmatpush1.msra.mxu0 0.0
    %139 = vmatprep.subr.mxu0 0.0
    %140 = vmatpush1.msra.mxu0 0.0
    %141 = vmatprep.subr.mxu0 0.0
    %142 = vmatpush1.msra.mxu0 0.0
    %143 = vmatprep.subr.mxu0 0.0
    %144 = vmatpush1.msra.mxu0 0.0
    %145 = vmatprep.subr.mxu0 0.0
    %146 = vmatpush1.msra.mxu0 0.0
    %147 = vmatprep.subr.mxu0 0.0
    %148 = vmatpush1.msra.mxu0 0.0
    %149 = vmatprep.subr.mxu0 0.0
    %150 = vmatpush1.msra.mxu0 0.0
    %151 = vmatprep.subr.mxu0 0.0
    %152 = vmatpush1.msra.mxu0 0.0
    %153 = vmatprep.subr.mxu0 0.0
    %154 = vmatpush1.msra.mxu0 0.0
    %155 = vmatprep.subr.mxu0 0.0
    %156 = vmatpush1.msra.mxu0 0.0
    %157 = vmatprep.subr.mxu0 0.0
    %158 = vmatpush1.msra.mxu0 0.0
    %159 = vmatprep.subr.mxu0 0.0
    %160 = vmatpush1.msra.mxu0 0.0
    %161 = vmatprep.subr.mxu0 0.0
    %162 = vmatpush1.msra.mxu0 0.0
    %163 = vmatprep.subr.mxu0 0.0
    %164 = vmatpush1.msra.mxu0 0.0
    %165 = vmatprep.subr.mxu0 0.0
    %166 = vmatpush1.msra.mxu0 0.0
    %167 = vmatprep.subr.mxu0 0.0
    %168 = vmatpush1.msra.mxu0 0.0
    %169 = vmatprep.subr.mxu0 0.0
    %170 = vmatpush1.msra.mxu0 0.0
    %171 = vmatprep.subr.mxu0 0.0
    %172 = vmatpush1.msra.mxu0 0.0
    %173 = vmatprep.subr.mxu0 0.0
    %174 = vmatpush1.msra.mxu0 0.0
    %175 = vmatprep.subr.mxu0 0.0
    %176 = vmatpush1.msra.mxu0 0.0
    %177 = vmatprep.subr.mxu0 0.0
    %178 = vmatpush1.msra.mxu0 0.0
    %179 = vmatprep.subr.mxu0 0.0
    %180 = vmatpush1.msra.mxu0 0.0
    %181 = vmatprep.subr.mxu0 0.0
    %182 = vmatpush1.msra.mxu0 0.0
    %183 = vmatprep.subr.mxu0 0.0
    %184 = vmatpush1.msra.mxu0 0.0
    %185 = vmatprep.subr.mxu0 0.0
    %186 = vmatpush1.msra.mxu0 0.0
    %187 = vmatprep.mubr.f32.mxu0 0.0
    %188 = vmatmul.mubr.f32.gmra.mrb[0].mxu0 %v117
    %v189 = vpop.f32.mrb[0].mxu0
    %v190 = vadd.f32 %v114, %v189
    %v191 = vpop.f32.mrb[0].mxu0
    %192 = vdwg.mxu0
    %v193 = vld [vmem:[%s35] sm:$0xff]
    %v194 = vld [vmem:[%s35 + $0x8] sm:$0xff]
    %vm195 = vcmask 48128
    %v196 = vsel %vm195, %v193, 0.0
    %v197 = vsel %vm195, %v194, 0.0
    %v198 = vadd.f32 %v196, %v197
    %v199 = vrot.slane %v198, 4
    %v200 = vadd.f32 %v198, %v199
    %v201 = vrot.slane %v200, 2
    %v202 = vadd.f32 %v200, %v201
    %v203 = vrot.slane %v202, 1
    %v204 = vadd.f32 %v202, %v203
    %v205 = vmul.f32 %v204, 0.0625
    %v206 = vld [vmem:[%s3 + $0x8] sm:$0x3f]
    %v207 = vld [vmem:[%s3 + $0x18] sm:$0xff]
    %v208 = vld [vmem:[%s3 + $0x20] sm:$0xff]
    %v209 = vld [vmem:[%s3 + $0x28] sm:$0xff]
    %v210 = vld [vmem:[%s3 + $0x30] sm:$0xff]
    %v211 = vld [vmem:[%s3 + $0x38] sm:$0xff]
    %v212 = vld [vmem:[%s3 + $0x40] sm:$0xff]
    %v213 = vld [vmem:[%s3 + $0x48] sm:$0xff]
    %v214 = vld [vmem:[%s3 + $0x50] sm:$0xff]
    %v216 = vsel %vm195, %v205, 0
    %vm218 = vcmask 1045504
    %v220 = vsel %vm218, %v206, 0
    %222 = vmatprep.subr.mxu0 0.0
    %223 = vmatpush1.msra.mxu0 %v220
    %224 = vmatprep.subr.mxu0 0.0
    %225 = vmatpush1.msra.mxu0 0.0
    %226 = vmatprep.subr.mxu0 0.0
    %227 = vmatpush1.msra.mxu0 0.0
    %228 = vmatprep.subr.mxu0 0.0
    %229 = vmatpush1.msra.mxu0 0.0
    %230 = vmatprep.subr.mxu0 0.0
    %231 = vmatpush1.msra.mxu0 0.0
    %232 = vmatprep.subr.mxu0 0.0
    %233 = vmatpush1.msra.mxu0 0.0
    %234 = vmatprep.subr.mxu0 0.0
    %235 = vmatpush1.msra.mxu0 0.0
    %236 = vmatprep.subr.mxu0 0.0
    %237 = vmatpush1.msra.mxu0 0.0
    %238 = vmatprep.subr.mxu0 0.0
    %239 = vmatpush1.msra.mxu0 0.0
    %240 = vmatprep.subr.mxu0 0.0
    %241 = vmatpush1.msra.mxu0 0.0
    %242 = vmatprep.subr.mxu0 0.0
    %243 = vmatpush1.msra.mxu0 0.0
    %244 = vmatprep.subr.mxu0 0.0
    %245 = vmatpush1.msra.mxu0 0.0
    %246 = vmatprep.subr.mxu0 0.0
    %247 = vmatpush1.msra.mxu0 0.0
    %248 = vmatprep.subr.mxu0 0.0
    %249 = vmatpush1.msra.mxu0 0.0
    %250 = vmatprep.subr.mxu0 0.0
    %251 = vmatpush1.msra.mxu0 0.0
    %252 = vmatprep.subr.mxu0 0.0
    %253 = vmatpush1.msra.mxu0 0.0
    %254 = vmatprep.subr.mxu0 0.0
    %255 = vmatpush1.msra.mxu0 0.0
    %256 = vmatprep.subr.mxu0 0.0
    %257 = vmatpush1.msra.mxu0 0.0
    %258 = vmatprep.subr.mxu0 0.0
    %259 = vmatpush1.msra.mxu0 0.0
    %260 = vmatprep.subr.mxu0 0.0
    %261 = vmatpush1.msra.mxu0 0.0
    %262 = vmatprep.subr.mxu0 0.0
    %263 = vmatpush1.msra.mxu0 0.0
    %264 = vmatprep.subr.mxu0 0.0
    %265 = vmatpush1.msra.mxu0 0.0
    %266 = vmatprep.subr.mxu0 0.0
    %267 = vmatpush1.msra.mxu0 0.0
    %268 = vmatprep.subr.mxu0 0.0
    %269 = vmatpush1.msra.mxu0 0.0
    %270 = vmatprep.subr.mxu0 0.0
    %271 = vmatpush1.msra.mxu0 0.0
    %272 = vmatprep.subr.mxu0 0.0
    %273 = vmatpush1.msra.mxu0 0.0
    %274 = vmatprep.subr.mxu0 0.0
    %275 = vmatpush1.msra.mxu0 0.0
    %276 = vmatprep.subr.mxu0 0.0
    %277 = vmatpush1.msra.mxu0 0.0
    %278 = vmatprep.subr.mxu0 0.0
    %279 = vmatpush1.msra.mxu0 0.0
    %280 = vmatprep.subr.mxu0 0.0
    %281 = vmatpush1.msra.mxu0 0.0
    %282 = vmatprep.subr.mxu0 0.0
    %283 = vmatpush1.msra.mxu0 0.0
    %284 = vmatprep.subr.mxu0 0.0
    %285 = vmatpush1.msra.mxu0 0.0
    %286 = vmatprep.mubr.f32.mxu0 0.0
    %287 = vmatmul.mubr.f32.gmra.mrb[0].mxu0 %v216
    %v288 = vpop.f32.mrb[0].mxu0
    %v289 = vadd.f32 0.0, %v288
    %v290 = vpop.f32.mrb[0].mxu0
    %291 = vdwg.mxu0
    %v292 = vadd.f32 %v190, %v289
    %v293 = vmax.f32 %v292, 0.0
    %vm294 = vcmask 326656
    %v296 = vsel %vm294, %v293, 0
    %298 = vmatprep.subr.mxu0 0.0
    %299 = vmatpush1.msra.mxu0 %v207
    %300 = vmatprep.subr.mxu0 0.0
    %301 = vmatpush1.msra.mxu0 %v208
    %302 = vmatprep.subr.mxu0 0.0
    %303 = vmatpush1.msra.mxu0 %v209
    %304 = vmatprep.subr.mxu0 0.0
    %305 = vmatpush1.msra.mxu0 %v210
    %306 = vmatprep.subr.mxu0 0.0
    %307 = vmatpush1.msra.mxu0 %v211
    %308 = vmatprep.subr.mxu0 0.0
    %309 = vmatpush1.msra.mxu0 0.0
    %310 = vmatprep.subr.mxu0 0.0
    %311 = vmatpush1.msra.mxu0 0.0
    %312 = vmatprep.subr.mxu0 0.0
    %313 = vmatpush1.msra.mxu0 0.0
    %314 = vmatprep.subr.mxu0 0.0
    %315 = vmatpush1.msra.mxu0 0.0
    %316 = vmatprep.subr.mxu0 0.0
    %317 = vmatpush1.msra.mxu0 0.0
    %318 = vmatprep.subr.mxu0 0.0
    %319 = vmatpush1.msra.mxu0 0.0
    %320 = vmatprep.subr.mxu0 0.0
    %321 = vmatpush1.msra.mxu0 0.0
    %322 = vmatprep.subr.mxu0 0.0
    %323 = vmatpush1.msra.mxu0 0.0
    %324 = vmatprep.subr.mxu0 0.0
    %325 = vmatpush1.msra.mxu0 0.0
    %326 = vmatprep.subr.mxu0 0.0
    %327 = vmatpush1.msra.mxu0 0.0
    %328 = vmatprep.subr.mxu0 0.0
    %329 = vmatpush1.msra.mxu0 0.0
    %330 = vmatprep.subr.mxu0 0.0
    %331 = vmatpush1.msra.mxu0 0.0
    %332 = vmatprep.subr.mxu0 0.0
    %333 = vmatpush1.msra.mxu0 0.0
    %334 = vmatprep.subr.mxu0 0.0
    %335 = vmatpush1.msra.mxu0 0.0
    %336 = vmatprep.subr.mxu0 0.0
    %337 = vmatpush1.msra.mxu0 0.0
    %338 = vmatprep.subr.mxu0 0.0
    %339 = vmatpush1.msra.mxu0 0.0
    %340 = vmatprep.subr.mxu0 0.0
    %341 = vmatpush1.msra.mxu0 0.0
    %342 = vmatprep.subr.mxu0 0.0
    %343 = vmatpush1.msra.mxu0 0.0
    %344 = vmatprep.subr.mxu0 0.0
    %345 = vmatpush1.msra.mxu0 0.0
    %346 = vmatprep.subr.mxu0 0.0
    %347 = vmatpush1.msra.mxu0 0.0
    %348 = vmatprep.subr.mxu0 0.0
    %349 = vmatpush1.msra.mxu0 0.0
    %350 = vmatprep.subr.mxu0 0.0
    %351 = vmatpush1.msra.mxu0 0.0
    %352 = vmatprep.subr.mxu0 0.0
    %353 = vmatpush1.msra.mxu0 0.0
    %354 = vmatprep.subr.mxu0 0.0
    %355 = vmatpush1.msra.mxu0 0.0
    %356 = vmatprep.subr.mxu0 0.0
    %357 = vmatpush1.msra.mxu0 0.0
    %358 = vmatprep.subr.mxu0 0.0
    %359 = vmatpush1.msra.mxu0 0.0
    %360 = vmatprep.subr.mxu0 0.0
    %361 = vmatpush1.msra.mxu0 0.0
    %362 = vmatprep.mubr.f32.mxu0 0.0
    %363 = vmatmul.mubr.f32.gmra.mrb[0].mxu0 %v296
    %v364 = vpop.f32.mrb[0].mxu0
    %v365 = vadd.f32 0.0, %v364
    %v366 = vpop.f32.mrb[0].mxu0
    %367 = vdwg.mxu0
    %v368 = vmax.f32 %v365, 0.0
    %vm369 = vcmask 195584
    %v371 = vsel %vm369, %v368, 0
    %373 = vmatprep.subr.mxu0 0.0
    %374 = vmatpush1.msra.mxu0 %v212
    %375 = vmatprep.subr.mxu0 0.0
    %376 = vmatpush1.msra.mxu0 %v213
    %377 = vmatprep.subr.mxu0 0.0
    %378 = vmatpush1.msra.mxu0 %v214
    %379 = vmatprep.subr.mxu0 0.0
    %380 = vmatpush1.msra.mxu0 0.0
    %381 = vmatprep.subr.mxu0 0.0
    %382 = vmatpush1.msra.mxu0 0.0
    %383 = vmatprep.subr.mxu0 0.0
    %384 = vmatpush1.msra.mxu0 0.0
    %385 = vmatprep.subr.mxu0 0.0
    %386 = vmatpush1.msra.mxu0 0.0
    %387 = vmatprep.subr.mxu0 0.0
    %388 = vmatpush1.msra.mxu0 0.0
    %389 = vmatprep.subr.mxu0 0.0
    %390 = vmatpush1.msra.mxu0 0.0
    %391 = vmatprep.subr.mxu0 0.0
    %392 = vmatpush1.msra.mxu0 0.0
    %393 = vmatprep.subr.mxu0 0.0
    %394 = vmatpush1.msra.mxu0 0.0
    %395 = vmatprep.subr.mxu0 0.0
    %396 = vmatpush1.msra.mxu0 0.0
    %397 = vmatprep.subr.mxu0 0.0
    %398 = vmatpush1.msra.mxu0 0.0
    %399 = vmatprep.subr.mxu0 0.0
    %400 = vmatpush1.msra.mxu0 0.0
    %401 = vmatprep.subr.mxu0 0.0
    %402 = vmatpush1.msra.mxu0 0.0
    %403 = vmatprep.subr.mxu0 0.0
    %404 = vmatpush1.msra.mxu0 0.0
    %405 = vmatprep.subr.mxu0 0.0
    %406 = vmatpush1.msra.mxu0 0.0
    %407 = vmatprep.subr.mxu0 0.0
    %408 = vmatpush1.msra.mxu0 0.0
    %409 = vmatprep.subr.mxu0 0.0
    %410 = vmatpush1.msra.mxu0 0.0
    %411 = vmatprep.subr.mxu0 0.0
    %412 = vmatpush1.msra.mxu0 0.0
    %413 = vmatprep.subr.mxu0 0.0
    %414 = vmatpush1.msra.mxu0 0.0
    %415 = vmatprep.subr.mxu0 0.0
    %416 = vmatpush1.msra.mxu0 0.0
    %417 = vmatprep.subr.mxu0 0.0
    %418 = vmatpush1.msra.mxu0 0.0
    %419 = vmatprep.subr.mxu0 0.0
    %420 = vmatpush1.msra.mxu0 0.0
    %421 = vmatprep.subr.mxu0 0.0
    %422 = vmatpush1.msra.mxu0 0.0
    %423 = vmatprep.subr.mxu0 0.0
    %424 = vmatpush1.msra.mxu0 0.0
    %425 = vmatprep.subr.mxu0 0.0
    %426 = vmatpush1.msra.mxu0 0.0
    %427 = vmatprep.subr.mxu0 0.0
    %428 = vmatpush1.msra.mxu0 0.0
    %429 = vmatprep.subr.mxu0 0.0
    %430 = vmatpush1.msra.mxu0 0.0
    %431 = vmatprep.subr.mxu0 0.0
    %432 = vmatpush1.msra.mxu0 0.0
    %433 = vmatprep.subr.mxu0 0.0
    %434 = vmatpush1.msra.mxu0 0.0
    %435 = vmatprep.subr.mxu0 0.0
    %436 = vmatpush1.msra.mxu0 0.0
    %437 = vmatprep.mubr.f32.mxu0 0.0
    %438 = vmatmul.mubr.f32.gmra.mrb[0].mxu0 %v371
    %v439 = vpop.f32.mrb[0].mxu0
    %v440 = vadd.f32 0.0, %v439
    %v441 = vpop.f32.mrb[0].mxu0
    %442 = vdwg.mxu0
    %443 = vst [vmem:[#allocation4] sm:$0x1] %v440
    // Predicated region
    $region14: #{qgraph_predictor_forward.1} parent=1 // pred_check
      _
    $region15: #{qgraph_predictor_forward.1} parent=1 // pred_check_branch
      %445 = sbr.rel (0) target = $region17
    $region16: #{qgraph_predictor_forward.1} parent=1 // pred_region
      %s447 = ssub.s32 16, 16
      %448 = vsyncadd [#allocation5], %s447
      %s450 = sshll.u32 [#allocation4], 4
      %s451 = int_to_ptr.vmem [resolvable:$true] %s450
      %453 = dma.vmem_to_hbm [thread:$0]  %s451, 16, %s4, [#allocation5]
    $region17: #{qgraph_predictor_forward.1} parent=1 // pred_fallthru
      _
    // Predicated region
    $region18: #{qgraph_predictor_forward.1} parent=1 // pred_check
      _
    $region19: #{qgraph_predictor_forward.1} parent=1 // pred_check_branch
      %455 = sbr.rel (0) target = $region21
    $region20: #{qgraph_predictor_forward.1} parent=1 // pred_region
      %456 = dma.done [#allocation5], 16
    $region21: #{qgraph_predictor_forward.1} parent=1 // pred_fallthru
      _
    %457 = vsyncpa [#allocation5], 1

</llo_original>
